<compile_context>
chip_gen: v5e
topology: v5e:2x2
jax: 0.10.0
libtpu: 0.0.40
codegen_flags: <defaults>
</compile_context>

<pallas_src>
import jax
import jax.numpy as jnp
from jax.experimental import pallas as pl
from jax.experimental.pallas import tpu as pltpu


def _round_up(x, m):
    return (x + m - 1) // m * m


def _padded_block_bytes(rows, cols, itemsize):
    # VMEM layout pads the sublane dim to 8 and the lane dim to 128.
    return _round_up(rows, 8) * _round_up(cols, 128) * itemsize


def _pick_vmem_limit(est_bytes):
    """vmem_limit_bytes with headroom, capped per generation."""
    try:
        phys = pltpu.get_tpu_info().vmem_capacity_bytes
    except Exception:
        phys = 64 * 1024 * 1024                     # conservative (v7x) fallback
    cap = int(phys * 0.75)                          # leave compiler headroom
    want = max(32 * 1024 * 1024, int(est_bytes * 1.5) + (4 << 20))
    return int(min(want, cap))


def _make_conv_bn_act_kernel(taps, m_img, use_act, approx_recip):
    """taps: static list of (tap_index, phase_index, flat lane offset)."""

    def kernel(x_ref, w_ref, shift_ref, o_ref):
        # x_ref:     (P, Cin, L)         padded, phase-split, flattened image
        # w_ref:     (KH*KW, Cout, Cin)  BN-scale-folded weights, one per tap
        # shift_ref: (Cout, 1)           BN shift (beta - mean*scale), f32
        # o_ref:     (Cout, M_img)       lane-dense output (M_img = Hout * Wp)
        acc = None
        for t, p, off in taps:
            w_tap = w_ref[t]                                    # (Cout, Cin)
            x_tap = x_ref[p, :, pl.ds(off, m_img)]              # (Cin, M_img)
            d = jnp.dot(w_tap, x_tap, preferred_element_type=jnp.float32)
            acc = d if acc is None else acc + d
        y = acc + shift_ref[...]                                # fused BN shift
        if use_act:
            # SiLU: exp + reciprocal both run on the otherwise-idle EUP slot.
            y = y * pl.reciprocal(1.0 + jnp.exp(-y), approx=approx_recip)
        o_ref[...] = y.astype(o_ref.dtype)

    return kernel


def conv_layer(x_nchw, weight_oihw, scale, shift, *, stride=(1, 1),
               use_act=True, matmul_dtype=jnp.bfloat16):
    """Fused Conv2d (+BN affine) (+SiLU).  x: NCHW, weight: OIHW (PyTorch).

    matmul_dtype: dtype fed to the MXU (accumulation is always f32).  Default
    bf16 halves input DMA / VMEM and ~doubles MXU rate; pass jnp.float32 for
    exact-precision parity with the f32 reference.
    """
    N, Cin, H, W = x_nchw.shape
    Cout, Cin_w, KH, KW = weight_oihw.shape
    assert Cin_w == Cin, "only groups == 1 is supported"
    sh, sw = stride
    ph, pw = (KH - 1) // 2, (KW - 1) // 2               # matches int((k-1)/2)
    Hout = (H + 2 * ph - KH) // sh + 1
    Wout = (W + 2 * pw - KW) // sw + 1
    matmul_dtype = jnp.dtype(matmul_dtype)
    approx_recip = matmul_dtype != jnp.dtype(jnp.float32)
    out_dtype = x_nchw.dtype

    # ---- fold BN scale into the weights (in f32, before any low-prec cast) --
    w_f32 = (weight_oihw.astype(jnp.float32)
             * scale.astype(jnp.float32)[:, None, None, None])
    shift_f32 = shift.astype(jnp.float32)
    Cout_pad = _round_up(Cout, 8)          # sublane-aligned accumulator rows
    if Cout_pad != Cout:
        w_f32 = jnp.pad(w_f32, ((0, Cout_pad - Cout), (0, 0), (0, 0), (0, 0)))
        shift_f32 = jnp.pad(shift_f32, (0, Cout_pad - Cout))
    # (KH*KW, Cout_pad, Cin): one (Cout, Cin) matrix per tap (row order = taps)
    w_taps = jnp.transpose(w_f32, (2, 3, 0, 1)).reshape(KH * KW, Cout_pad, Cin)
    w_taps = w_taps.astype(matmul_dtype)
    shift_col = shift_f32.reshape(Cout_pad, 1)

    # ---- pad + phase-split + flatten the input (NO im2col amplification) ----
    H_pad, W_pad = H + 2 * ph, W + 2 * pw
    Hr, Wr = _round_up(H_pad, sh), _round_up(W_pad, sw)
    Hp, Wp = Hr // sh, Wr // sw
    P = sh * sw
    xp = jnp.pad(x_nchw.astype(matmul_dtype),
                 ((0, 0), (0, 0), (ph, ph + Hr - H_pad), (pw, pw + Wr - W_pad)))
    xr = xp.reshape(N, Cin, Hp, sh, Wp, sw)
    xr = jnp.transpose(xr, (0, 3, 5, 1, 2, 4)).reshape(N, P, Cin, Hp * Wp)

    # Static tap table: (tap index, phase index, flat lane offset).  Because
    # the output is computed at the padded row pitch Wp, every tap is a pure
    # unit-stride lane shift of the flattened phase.
    taps = []
    for kh in range(KH):
        for kw in range(KW):
            taps.append((kh * KW + kw,
                         (kh % sh) * sw + (kw % sw),
                         (kh // sh) * Wp + (kw // sw)))
    m_img = Hout * Wp
    tail = max(off for _, _, off in taps)
    L = Hp * Wp
    if L < m_img + tail:                   # keep every tap window in-bounds
        xr = jnp.pad(xr, ((0, 0), (0, 0), (0, 0), (0, m_img + tail - L)))
        L = m_img + tail

    # ---- VMEM budget: every resident block + double buffering + headroom ----
    in_item = matmul_dtype.itemsize
    out_item = jnp.dtype(out_dtype).itemsize
    est = (2 * P * _padded_block_bytes(Cin, L, in_item)             # x (2-buf)
           + 2 * _padded_block_bytes(Cout_pad, m_img, out_item)     # out (2-buf)
           + KH * KW * _padded_block_bytes(Cout_pad, Cin, in_item)  # weights
           + _padded_block_bytes(Cout_pad, 1, 4)                    # shift
           + 3 * _padded_block_bytes(Cout_pad, m_img, 4))           # f32 acc+temps
    vmem_limit = _pick_vmem_limit(est)

    out_flat = pl.pallas_call(
        _make_conv_bn_act_kernel(taps, m_img, use_act, approx_recip),
        out_shape=jax.ShapeDtypeStruct((N, Cout_pad, m_img), out_dtype),
        grid=(N,),
        in_specs=[
            pl.BlockSpec((None, P, Cin, L), lambda n: (n, 0, 0, 0)),      # x: once/image
            pl.BlockSpec((KH * KW, Cout_pad, Cin), lambda n: (0, 0, 0)),  # weights: resident
            pl.BlockSpec((Cout_pad, 1), lambda n: (0, 0)),                # BN shift
        ],
        out_specs=pl.BlockSpec((None, Cout_pad, m_img), lambda n: (n, 0, 0)),
        compiler_params=pltpu.CompilerParams(
            dimension_semantics=("parallel",),   # images independent -> 2 TCs on v7x
            vmem_limit_bytes=vmem_limit,
        ),
    )(xr, w_taps, shift_col)

    # Native layout is already (N, C, h, w'); NCHW needs only a slice of the
    # padded row pitch Wp -> Wout (no transpose round-trip).
    out = out_flat.reshape(N, Cout_pad, Hout, Wp)[:, :Cout, :, :Wout]
    return out


def reference(x, weight, gamma, beta, mean, var, eps, stride, use_act):
    KH, KW = weight.shape[2], weight.shape[3]
    ph, pw = (KH - 1) // 2, (KW - 1) // 2
    y = jax.lax.conv_general_dilated(
        x, weight, window_strides=stride, padding=[(ph, ph), (pw, pw)],
        dimension_numbers=("NCHW", "OIHW", "NCHW"))
    y = (y - mean[None, :, None, None]) / jnp.sqrt(var[None, :, None, None] + eps)
    y = y * gamma[None, :, None, None] + beta[None, :, None, None]
    if use_act:
        y = y * jax.nn.sigmoid(y)
    return y


if __name__ == "__main__":
    # ConvLayer(in_channels=4, out_channels=8, kernel_size=3, stride=1,
    #           groups=1, bias=False, use_norm=True, use_act=True)
    N, Cin, H, W = 2, 4, 16, 16
    Cout, Kk = 8, 3
    eps = 1e-5

    key = jax.random.PRNGKey(0)
    k1, k2, k3, k4, k5, k6 = jax.random.split(key, 6)
    x = jax.random.normal(k1, (N, Cin, H, W), jnp.float32)
    weight = jax.random.normal(k2, (Cout, Cin, Kk, Kk), jnp.float32) * 0.1
    gamma = 1.0 + 0.1 * jax.random.normal(k3, (Cout,), jnp.float32)
    beta = 0.1 * jax.random.normal(k4, (Cout,), jnp.float32)
    running_mean = 0.1 * jax.random.normal(k5, (Cout,), jnp.float32)
    running_var = jax.nn.softplus(jax.random.normal(k6, (Cout,), jnp.float32)) + 0.5

    # Fold inference-mode BatchNorm into a per-channel affine (conv bias=False).
    scale = gamma / jnp.sqrt(running_var + eps)
    shift = beta - running_mean * scale

    # 1) stride 1, f32 MXU inputs -> exact-precision parity with the reference
    out = conv_layer(x, weight, scale, shift, stride=(1, 1), use_act=True,
                     matmul_dtype=jnp.float32)
    out = jax.block_until_ready(out)
    ref = reference(x, weight, gamma, beta, running_mean, running_var, eps, (1, 1), True)
    assert out.shape == ref.shape, (out.shape, ref.shape)
    assert jnp.allclose(out, ref, atol=2e-4, rtol=2e-4), \
        float(jnp.max(jnp.abs(out - ref)))

    # 2) stride 2 (de-strided via wrapper phase split), f32 MXU inputs
    out2 = conv_layer(x, weight, scale, shift, stride=(2, 2), use_act=True,
                      matmul_dtype=jnp.float32)
    out2 = jax.block_until_ready(out2)
    ref2 = reference(x, weight, gamma, beta, running_mean, running_var, eps, (2, 2), True)
    assert out2.shape == ref2.shape, (out2.shape, ref2.shape)
    assert jnp.allclose(out2, ref2, atol=2e-4, rtol=2e-4), \
        float(jnp.max(jnp.abs(out2 - ref2)))

    # 3) default path: bf16 MXU inputs, f32 accumulation (looser tolerance)
    out3 = conv_layer(x, weight, scale, shift, stride=(1, 1), use_act=True)
    out3 = jax.block_until_ready(out3)
    assert jnp.allclose(out3, ref, atol=5e-2, rtol=5e-2), \
        float(jnp.max(jnp.abs(out3 - ref)))

    # 4) no activation branch
    out4 = conv_layer(x, weight, scale, shift, stride=(1, 1), use_act=False,
                      matmul_dtype=jnp.float32)
    out4 = jax.block_until_ready(out4)
    ref4 = reference(x, weight, gamma, beta, running_mean, running_var, eps, (1, 1), False)
    assert jnp.allclose(out4, ref4, atol=2e-4, rtol=2e-4), \
        float(jnp.max(jnp.abs(out4 - ref4)))

    print("KERNEL_OK")
</pallas_src>

<mosaic_0001>
module attributes {stable_mosaic.version = 11 : i64} {
  func.func @kernel(%arg0: i32, %arg1: memref<1x1x4x326xf32, #tpu.memory_space<vmem>>, %arg2: memref<9x8x4xf32, #tpu.memory_space<vmem>>, %arg3: memref<8x1xf32, #tpu.memory_space<vmem>>, %arg4: memref<1x8x288xf32, #tpu.memory_space<vmem>>) attributes {dimension_semantics = [#tpu.dimension_semantics<parallel>], iteration_bounds = array<i64: 2>, scalar_prefetch = 0 : i64, scratch_operands = 0 : i64, tpu.core_type = #tpu.core_type<tc>, window_params = [{transform_indices = @transform_0, window_bounds = array<i64: 1, 1, 4, 326>}, {pipeline_mode = #tpu.pipeline_mode<synchronous>, transform_indices = @transform_1, window_bounds = array<i64: 9, 8, 4>}, {pipeline_mode = #tpu.pipeline_mode<synchronous>, transform_indices = @transform_2, window_bounds = array<i64: 8, 1>}, {transform_indices = @transform_3, window_bounds = array<i64: 1, 8, 288>}]} {
    %c0 = arith.constant 0 : index
    %c0_0 = arith.constant 0 : index
    %c0_1 = arith.constant 0 : index
    %0 = vector.load %arg2[%c0, %c0_0, %c0_1] : memref<9x8x4xf32, #tpu.memory_space<vmem>>, vector<1x8x4xf32>
    %1 = vector.shape_cast %0 : vector<1x8x4xf32> to vector<8x4xf32>
    %c0_2 = arith.constant 0 : index
    %c0_3 = arith.constant 0 : index
    %c0_4 = arith.constant 0 : index
    %c0_5 = arith.constant 0 : index
    %2 = vector.load %arg1[%c0_2, %c0_3, %c0_4, %c0_5] : memref<1x1x4x326xf32, #tpu.memory_space<vmem>>, vector<1x1x4x288xf32>
    %3 = vector.shape_cast %2 : vector<1x1x4x288xf32> to vector<4x288xf32>
    %cst = arith.constant dense<0.000000e+00> : vector<8x288xf32>
    %4 = tpu.matmul %1, %3, %cst {dimension_numbers = #tpu.dot_dimension_numbers<[1], [0], [0], [1], [0, 0, 1, 1], [], []>} : vector<8x4xf32>, vector<4x288xf32>, vector<8x288xf32> -> vector<8x288xf32>
    %c1 = arith.constant 1 : index
    %c0_6 = arith.constant 0 : index
    %c0_7 = arith.constant 0 : index
    %5 = vector.load %arg2[%c1, %c0_6, %c0_7] : memref<9x8x4xf32, #tpu.memory_space<vmem>>, vector<1x8x4xf32>
    %6 = vector.shape_cast %5 : vector<1x8x4xf32> to vector<8x4xf32>
    %c0_8 = arith.constant 0 : index
    %c0_9 = arith.constant 0 : index
    %c0_10 = arith.constant 0 : index
    %c1_11 = arith.constant 1 : index
    %7 = vector.load %arg1[%c0_8, %c0_9, %c0_10, %c1_11] : memref<1x1x4x326xf32, #tpu.memory_space<vmem>>, vector<1x1x4x288xf32>
    %8 = vector.shape_cast %7 : vector<1x1x4x288xf32> to vector<4x288xf32>
    %cst_12 = arith.constant dense<0.000000e+00> : vector<8x288xf32>
    %9 = tpu.matmul %6, %8, %cst_12 {dimension_numbers = #tpu.dot_dimension_numbers<[1], [0], [0], [1], [0, 0, 1, 1], [], []>} : vector<8x4xf32>, vector<4x288xf32>, vector<8x288xf32> -> vector<8x288xf32>
    %10 = arith.addf %4, %9 : vector<8x288xf32>
    %c2 = arith.constant 2 : index
    %c0_13 = arith.constant 0 : index
    %c0_14 = arith.constant 0 : index
    %11 = vector.load %arg2[%c2, %c0_13, %c0_14] : memref<9x8x4xf32, #tpu.memory_space<vmem>>, vector<1x8x4xf32>
    %12 = vector.shape_cast %11 : vector<1x8x4xf32> to vector<8x4xf32>
    %c0_15 = arith.constant 0 : index
    %c0_16 = arith.constant 0 : index
    %c0_17 = arith.constant 0 : index
    %c2_18 = arith.constant 2 : index
    %13 = vector.load %arg1[%c0_15, %c0_16, %c0_17, %c2_18] : memref<1x1x4x326xf32, #tpu.memory_space<vmem>>, vector<1x1x4x288xf32>
    %14 = vector.shape_cast %13 : vector<1x1x4x288xf32> to vector<4x288xf32>
    %cst_19 = arith.constant dense<0.000000e+00> : vector<8x288xf32>
    %15 = tpu.matmul %12, %14, %cst_19 {dimension_numbers = #tpu.dot_dimension_numbers<[1], [0], [0], [1], [0, 0, 1, 1], [], []>} : vector<8x4xf32>, vector<4x288xf32>, vector<8x288xf32> -> vector<8x288xf32>
    %16 = arith.addf %10, %15 : vector<8x288xf32>
    %c3 = arith.constant 3 : index
    %c0_20 = arith.constant 0 : index
    %c0_21 = arith.constant 0 : index
    %17 = vector.load %arg2[%c3, %c0_20, %c0_21] : memref<9x8x4xf32, #tpu.memory_space<vmem>>, vector<1x8x4xf32>
    %18 = vector.shape_cast %17 : vector<1x8x4xf32> to vector<8x4xf32>
    %c0_22 = arith.constant 0 : index
    %c0_23 = arith.constant 0 : index
    %c0_24 = arith.constant 0 : index
    %c18 = arith.constant 18 : index
    %19 = vector.load %arg1[%c0_22, %c0_23, %c0_24, %c18] : memref<1x1x4x326xf32, #tpu.memory_space<vmem>>, vector<1x1x4x288xf32>
    %20 = vector.shape_cast %19 : vector<1x1x4x288xf32> to vector<4x288xf32>
    %cst_25 = arith.constant dense<0.000000e+00> : vector<8x288xf32>
    %21 = tpu.matmul %18, %20, %cst_25 {dimension_numbers = #tpu.dot_dimension_numbers<[1], [0], [0], [1], [0, 0, 1, 1], [], []>} : vector<8x4xf32>, vector<4x288xf32>, vector<8x288xf32> -> vector<8x288xf32>
    %22 = arith.addf %16, %21 : vector<8x288xf32>
    %c4 = arith.constant 4 : index
    %c0_26 = arith.constant 0 : index
    %c0_27 = arith.constant 0 : index
    %23 = vector.load %arg2[%c4, %c0_26, %c0_27] : memref<9x8x4xf32, #tpu.memory_space<vmem>>, vector<1x8x4xf32>
    %24 = vector.shape_cast %23 : vector<1x8x4xf32> to vector<8x4xf32>
    %c0_28 = arith.constant 0 : index
    %c0_29 = arith.constant 0 : index
    %c0_30 = arith.constant 0 : index
    %c19 = arith.constant 19 : index
    %25 = vector.load %arg1[%c0_28, %c0_29, %c0_30, %c19] : memref<1x1x4x326xf32, #tpu.memory_space<vmem>>, vector<1x1x4x288xf32>
    %26 = vector.shape_cast %25 : vector<1x1x4x288xf32> to vector<4x288xf32>
    %cst_31 = arith.constant dense<0.000000e+00> : vector<8x288xf32>
    %27 = tpu.matmul %24, %26, %cst_31 {dimension_numbers = #tpu.dot_dimension_numbers<[1], [0], [0], [1], [0, 0, 1, 1], [], []>} : vector<8x4xf32>, vector<4x288xf32>, vector<8x288xf32> -> vector<8x288xf32>
    %28 = arith.addf %22, %27 : vector<8x288xf32>
    %c5 = arith.constant 5 : index
    %c0_32 = arith.constant 0 : index
    %c0_33 = arith.constant 0 : index
    %29 = vector.load %arg2[%c5, %c0_32, %c0_33] : memref<9x8x4xf32, #tpu.memory_space<vmem>>, vector<1x8x4xf32>
    %30 = vector.shape_cast %29 : vector<1x8x4xf32> to vector<8x4xf32>
    %c0_34 = arith.constant 0 : index
    %c0_35 = arith.constant 0 : index
    %c0_36 = arith.constant 0 : index
    %c20 = arith.constant 20 : index
    %31 = vector.load %arg1[%c0_34, %c0_35, %c0_36, %c20] : memref<1x1x4x326xf32, #tpu.memory_space<vmem>>, vector<1x1x4x288xf32>
    %32 = vector.shape_cast %31 : vector<1x1x4x288xf32> to vector<4x288xf32>
    %cst_37 = arith.constant dense<0.000000e+00> : vector<8x288xf32>
    %33 = tpu.matmul %30, %32, %cst_37 {dimension_numbers = #tpu.dot_dimension_numbers<[1], [0], [0], [1], [0, 0, 1, 1], [], []>} : vector<8x4xf32>, vector<4x288xf32>, vector<8x288xf32> -> vector<8x288xf32>
    %34 = arith.addf %28, %33 : vector<8x288xf32>
    %c6 = arith.constant 6 : index
    %c0_38 = arith.constant 0 : index
    %c0_39 = arith.constant 0 : index
    %35 = vector.load %arg2[%c6, %c0_38, %c0_39] : memref<9x8x4xf32, #tpu.memory_space<vmem>>, vector<1x8x4xf32>
    %36 = vector.shape_cast %35 : vector<1x8x4xf32> to vector<8x4xf32>
    %c0_40 = arith.constant 0 : index
    %c0_41 = arith.constant 0 : index
    %c0_42 = arith.constant 0 : index
    %c36 = arith.constant 36 : index
    %37 = vector.load %arg1[%c0_40, %c0_41, %c0_42, %c36] : memref<1x1x4x326xf32, #tpu.memory_space<vmem>>, vector<1x1x4x288xf32>
    %38 = vector.shape_cast %37 : vector<1x1x4x288xf32> to vector<4x288xf32>
    %cst_43 = arith.constant dense<0.000000e+00> : vector<8x288xf32>
    %39 = tpu.matmul %36, %38, %cst_43 {dimension_numbers = #tpu.dot_dimension_numbers<[1], [0], [0], [1], [0, 0, 1, 1], [], []>} : vector<8x4xf32>, vector<4x288xf32>, vector<8x288xf32> -> vector<8x288xf32>
    %40 = arith.addf %34, %39 : vector<8x288xf32>
    %c7 = arith.constant 7 : index
    %c0_44 = arith.constant 0 : index
    %c0_45 = arith.constant 0 : index
    %41 = vector.load %arg2[%c7, %c0_44, %c0_45] : memref<9x8x4xf32, #tpu.memory_space<vmem>>, vector<1x8x4xf32>
    %42 = vector.shape_cast %41 : vector<1x8x4xf32> to vector<8x4xf32>
    %c0_46 = arith.constant 0 : index
    %c0_47 = arith.constant 0 : index
    %c0_48 = arith.constant 0 : index
    %c37 = arith.constant 37 : index
    %43 = vector.load %arg1[%c0_46, %c0_47, %c0_48, %c37] : memref<1x1x4x326xf32, #tpu.memory_space<vmem>>, vector<1x1x4x288xf32>
    %44 = vector.shape_cast %43 : vector<1x1x4x288xf32> to vector<4x288xf32>
    %cst_49 = arith.constant dense<0.000000e+00> : vector<8x288xf32>
    %45 = tpu.matmul %42, %44, %cst_49 {dimension_numbers = #tpu.dot_dimension_numbers<[1], [0], [0], [1], [0, 0, 1, 1], [], []>} : vector<8x4xf32>, vector<4x288xf32>, vector<8x288xf32> -> vector<8x288xf32>
    %46 = arith.addf %40, %45 : vector<8x288xf32>
    %c8 = arith.constant 8 : index
    %c0_50 = arith.constant 0 : index
    %c0_51 = arith.constant 0 : index
    %47 = vector.load %arg2[%c8, %c0_50, %c0_51] : memref<9x8x4xf32, #tpu.memory_space<vmem>>, vector<1x8x4xf32>
    %48 = vector.shape_cast %47 : vector<1x8x4xf32> to vector<8x4xf32>
    %c0_52 = arith.constant 0 : index
    %c0_53 = arith.constant 0 : index
    %c0_54 = arith.constant 0 : index
    %c38 = arith.constant 38 : index
    %49 = vector.load %arg1[%c0_52, %c0_53, %c0_54, %c38] : memref<1x1x4x326xf32, #tpu.memory_space<vmem>>, vector<1x1x4x288xf32>
    %50 = vector.shape_cast %49 : vector<1x1x4x288xf32> to vector<4x288xf32>
    %cst_55 = arith.constant dense<0.000000e+00> : vector<8x288xf32>
    %51 = tpu.matmul %48, %50, %cst_55 {dimension_numbers = #tpu.dot_dimension_numbers<[1], [0], [0], [1], [0, 0, 1, 1], [], []>} : vector<8x4xf32>, vector<4x288xf32>, vector<8x288xf32> -> vector<8x288xf32>
    %52 = arith.addf %46, %51 : vector<8x288xf32>
    %c0_56 = arith.constant 0 : index
    %c0_57 = arith.constant 0 : index
    %53 = vector.load %arg3[%c0_56, %c0_57] : memref<8x1xf32, #tpu.memory_space<vmem>>, vector<8x1xf32>
    %54 = vector.broadcast %53 : vector<8x1xf32> to vector<8x288xf32>
    %55 = arith.addf %52, %54 : vector<8x288xf32>
    %cst_58 = arith.constant 0.000000e+00 : f32
    %56 = vector.broadcast %cst_58 : f32 to vector<8x288xf32>
    %57 = arith.subf %56, %55 : vector<8x288xf32>
    %58 = math.exp %57 : vector<8x288xf32>
    %cst_59 = arith.constant 1.000000e+00 : f32
    %59 = vector.broadcast %cst_59 : f32 to vector<8x288xf32>
    %60 = arith.addf %59, %58 : vector<8x288xf32>
    %61 = tpu.reciprocal %60 : vector<8x288xf32> -> vector<8x288xf32>
    %62 = arith.mulf %55, %61 : vector<8x288xf32>
    %c0_60 = arith.constant 0 : index
    %c0_61 = arith.constant 0 : index
    %c0_62 = arith.constant 0 : index
    %63 = vector.load %arg4[%c0_60, %c0_61, %c0_62] : memref<1x8x288xf32, #tpu.memory_space<vmem>>, vector<1x8x288xf32>
    %64 = vector.shape_cast %63 : vector<1x8x288xf32> to vector<8x288xf32>
    %65 = vector.shape_cast %62 : vector<8x288xf32> to vector<1x8x288xf32>
    tpu.vector_store %arg4[%c0_60, %c0_61, %c0_62], %65 {strides = array<i32>} : memref<1x8x288xf32, #tpu.memory_space<vmem>>, vector<1x8x288xf32>,
    return
  }
  func.func @transform_0(%arg0: i32) -> (i32, i32, i32, i32) {
    %c0_i32 = arith.constant 0 : i32
    %c0_i32_0 = arith.constant 0 : i32
    %c0_i32_1 = arith.constant 0 : i32
    %c0_i32_2 = arith.constant 0 : i32
    return %arg0, %c0_i32, %c0_i32_0, %c0_i32_1 : i32, i32, i32, i32
  }
  func.func @transform_1(%arg0: i32) -> (i32, i32, i32) {
    %c0_i32 = arith.constant 0 : i32
    %c0_i32_0 = arith.constant 0 : i32
    %c0_i32_1 = arith.constant 0 : i32
    %c0_i32_2 = arith.constant 0 : i32
    return %c0_i32, %c0_i32_0, %c0_i32_1 : i32, i32, i32
  }
  func.func @transform_2(%arg0: i32) -> (i32, i32) {
    %c0_i32 = arith.constant 0 : i32
    %c0_i32_0 = arith.constant 0 : i32
    %c0_i32_1 = arith.constant 0 : i32
    return %c0_i32, %c0_i32_0 : i32, i32
  }
  func.func @transform_3(%arg0: i32) -> (i32, i32, i32) {
    %c0_i32 = arith.constant 0 : i32
    %c0_i32_0 = arith.constant 0 : i32
    %c0_i32_1 = arith.constant 0 : i32
    return %arg0, %c0_i32, %c0_i32_0 : i32, i32, i32
  }
}

</mosaic_0001>

<llo_original>
// kernel: tpu_custom_call.1
$region0: #{tpu_custom_call.1}
  #allocation0 [shape = 'u32[]', space=smem, size = 0x4, offset = 0x4, fixed_abs, tag = 'smem constant byte address 0x4 - core index']
  #allocation1 [shape = 'u32[72,128]{1,0:T(1,128)}', space=vmem, size = 0x9000, scoped, tag = 'internal scratch']
  %s0 = inlined_call_operand.vmem [shape: f32[2,1,4,326], index: 0, kind: input, shape index: {}]
  %s1 = inlined_call_operand.vmem [shape: f32[9,8,4], index: 1, kind: input, shape index: {}]
  %s2 = inlined_call_operand.vmem [shape: f32[8,1], index: 2, kind: input, shape index: {}]
  %s3 = inlined_call_operand.hbm [shape: f32[2,8,288], index: 3, kind: output, shape index: {}]
  %s4 = sld [smem:[#allocation0]]
  $region45: #{tpu_custom_call.1} parent=0
    _
  %s6 = ssub.s32 1, %s4
  %s7 = scalar_select 0, %s6, %s4
  $region1: #{tpu_custom_call.1} parent=0
    #allocation2 [shape = 'u8[24576]{0}', space=vmem, size = 0x6000, scoped, tag = 'output window, operand 0']
    #allocation3 [shape = 's32[2]{0}', space=sflag, size = 0x8, scoped, tag = 'scoped memory for tpu_custom_call.1']
    %8 = vsyncpa [#allocation3], 0
    %s9 = scalar_lea.sflag [#allocation3], 1
    %10 = vsyncpa %s9, 0
    loop: start=0, step=1, limit=4
    $region2: #{tpu_custom_call.1} parent=1 // loop_pre_header
      _
    $region3: #{tpu_custom_call.1} parent=1 // loop_header
      %s12 = sphi 0, %s16
      %p13 = scmp.ge.s32.totalorder %s12, 4
      %s22 = sphi 0, %s24
      %s25 = sphi 0, %s22
      %s26 = sphi 0, %s25
      %s42 = sphi 0, %s26
      %s46 = sphi 0, %s46
      %s48 = sphi 0, %s46
      %s49 = sphi 0, %s48
      %s63 = sphi 0, %s49
      %s67 = sphi 0, %s67
      %s69 = sphi 0, %s67
      %s70 = sphi 0, %s69
      %s84 = sphi 0, %s70
      %s90 = sphi 0, %s92
      %s93 = sphi 0, %s90
      %s94 = sphi 0, %s93
      %s110 = sphi 0, %s94
    $region4: #{tpu_custom_call.1} parent=1 // loop_header_branch
      %15 = sbr.rel (%p13) target = $region8
    $region5: #{tpu_custom_call.1} parent=1 // loop_body
      %s17 = ssub.s32 %s12, 1
      %s18 = ssub.s32 %s12, 2
      %s19 = sadd.s32 %s12, 1
      %s20 = ssub.s32 %s12, %s19
      %p21 = scmp.eq.s32.totalorder %s20, 0
      %s23 = sadd.s32 %s22, 1
      %s24 = scalar_select %p21, %s22, %s23
      %p27 = pneg %p21
      %p28 = scmp.eq.s32.totalorder %s12, 1
      %p29 = por %p27, %p28
      %p30 = scmp.ne.s32.totalorder %s22, %s25
      %p31 = scmp.eq.s32.totalorder %s12, 0
      %p32 = por %p30, %p31
      %p33 = scmp.ne.s32.totalorder %s22, %s25
      %p34 = scmp.eq.s32.totalorder %s17, 1
      %p35 = por %p33, %p34
      %p36 = scmp.ne.s32.totalorder %s25, %s26
      %p37 = scmp.eq.s32.totalorder %s17, 0
      %p38 = por %p36, %p37
      %p39 = scmp.ne.s32.totalorder %s25, %s26
      %p40 = scmp.eq.s32.totalorder %s18, 1
      %p41 = por %p39, %p40
      %p43 = scmp.ne.s32.totalorder %s26, %s42
      %p44 = scmp.eq.s32.totalorder %s18, 0
      %p45 = por %p43, %p44
      %s47 = sadd.s32 %s46, 1
      %p50 = scmp.eq.s32.totalorder %s12, 1
      %p51 = scmp.ne.s32.totalorder %s46, %s48
      %p52 = scmp.eq.s32.totalorder %s12, 0
      %p53 = por %p51, %p52
      %p54 = scmp.ne.s32.totalorder %s46, %s48
      %p55 = scmp.eq.s32.totalorder %s17, 1
      %p56 = por %p54, %p55
      %p57 = scmp.ne.s32.totalorder %s48, %s49
      %p58 = scmp.eq.s32.totalorder %s17, 0
      %p59 = por %p57, %p58
      %p60 = scmp.ne.s32.totalorder %s48, %s49
      %p61 = scmp.eq.s32.totalorder %s18, 1
      %p62 = por %p60, %p61
      %p64 = scmp.ne.s32.totalorder %s49, %s63
      %p65 = scmp.eq.s32.totalorder %s18, 0
      %p66 = por %p64, %p65
      %s68 = sadd.s32 %s67, 1
      %p71 = scmp.eq.s32.totalorder %s12, 1
      %p72 = scmp.ne.s32.totalorder %s67, %s69
      %p73 = scmp.eq.s32.totalorder %s12, 0
      %p74 = por %p72, %p73
      %p75 = scmp.ne.s32.totalorder %s67, %s69
      %p76 = scmp.eq.s32.totalorder %s17, 1
      %p77 = por %p75, %p76
      %p78 = scmp.ne.s32.totalorder %s69, %s70
      %p79 = scmp.eq.s32.totalorder %s17, 0
      %p80 = por %p78, %p79
      %p81 = scmp.ne.s32.totalorder %s69, %s70
      %p82 = scmp.eq.s32.totalorder %s18, 1
      %p83 = por %p81, %p82
      %p85 = scmp.ne.s32.totalorder %s70, %s84
      %p86 = scmp.eq.s32.totalorder %s18, 0
      %p87 = por %p85, %p86
      %s88 = ssub.s32 %s12, %s19
      %p89 = scmp.eq.s32.totalorder %s88, 0
      %s91 = sadd.s32 %s90, 1
      %s92 = scalar_select %p89, %s90, %s91
      %p95 = pneg %p89
      %p96 = scmp.eq.s32.totalorder %s12, 1
      %p97 = por %p95, %p96
      %p98 = scmp.ne.s32.totalorder %s90, %s93
      %p99 = scmp.eq.s32.totalorder %s12, 0
      %p100 = por %p98, %p99
      %p101 = scmp.ne.s32.totalorder %s90, %s93
      %p102 = scmp.eq.s32.totalorder %s17, 1
      %p103 = por %p101, %p102
      %p104 = scmp.ne.s32.totalorder %s93, %s94
      %p105 = scmp.eq.s32.totalorder %s17, 0
      %p106 = por %p104, %p105
      %p107 = scmp.ne.s32.totalorder %s93, %s94
      %p108 = scmp.eq.s32.totalorder %s18, 1
      %p109 = por %p107, %p108
      %p111 = scmp.ne.s32.totalorder %s94, %s110
      %p112 = scmp.eq.s32.totalorder %s18, 0
      %p113 = por %p111, %p112
      %p114 = scmp.le.s32.totalorder 1, %s12
      %p115 = scmp.lt.s32.totalorder %s12, 3
      %p116 = pnand %p114, %p115
      %p117 = pneg %p116
      // Predicated region
      $region9: #{tpu_custom_call.1} parent=5 // pred_check
        _
      $region10: #{tpu_custom_call.1} parent=5 // pred_check_branch
        %119 = sbr.rel (%p116) target = $region12
      $region11: #{tpu_custom_call.1} parent=5 // pred_region
        %s120 = ssub.s32 %s12, 1
        // Predicated region
        $region13: #{tpu_custom_call.1} parent=11 // pred_check
          %p121 = pneg %p59
        $region14: #{tpu_custom_call.1} parent=11 // pred_check_branch
          %123 = sbr.rel (%p121) target = $region16
        $region15: #{tpu_custom_call.1} parent=11 // pred_region
          _
        $region16: #{tpu_custom_call.1} parent=11 // pred_fallthru
          _
        // Predicated region
        $region17: #{tpu_custom_call.1} parent=11 // pred_check
          %p124 = pneg %p80
        $region18: #{tpu_custom_call.1} parent=11 // pred_check_branch
          %126 = sbr.rel (%p124) target = $region20
        $region19: #{tpu_custom_call.1} parent=11 // pred_region
          _
        $region20: #{tpu_custom_call.1} parent=11 // pred_fallthru
          _
      $region12: #{tpu_custom_call.1} parent=5 // pred_fallthru
        _
      %p127 = scmp.lt.s32.totalorder %s12, 2
      // Predicated region
      $region21: #{tpu_custom_call.1} parent=5 // pred_check
        %p128 = pneg %p127
      $region22: #{tpu_custom_call.1} parent=5 // pred_check_branch
        %130 = sbr.rel (%p128) target = $region24
      $region23: #{tpu_custom_call.1} parent=5 // pred_region
        // Predicated region
        $region25: #{tpu_custom_call.1} parent=23 // pred_check
          %p131 = pneg %p32
        $region26: #{tpu_custom_call.1} parent=23 // pred_check_branch
          %133 = sbr.rel (%p131) target = $region28
        $region27: #{tpu_custom_call.1} parent=23 // pred_region
          %p134 = scmp.lt.s32.totalorder %s12, 1
          %s135 = scalar_select %p134, %s12, 1
          %s136 = smul.addr %s135, 3
          %s137 = smul.addr %s136, 4
          %s138 = scalar_lea.vmem %s0, %s137
        $region28: #{tpu_custom_call.1} parent=23 // pred_fallthru
          _
      $region24: #{tpu_custom_call.1} parent=5 // pred_fallthru
        _
      %p139 = scmp.le.s32.totalorder 1, %s12
      %p140 = scmp.lt.s32.totalorder %s12, 3
      %p141 = pnand %p139, %p140
      %p142 = pneg %p141
      // Predicated region
      $region29: #{tpu_custom_call.1} parent=5 // pred_check
        _
      $region30: #{tpu_custom_call.1} parent=5 // pred_check_branch
        %144 = sbr.rel (%p141) target = $region32
      $region31: #{tpu_custom_call.1} parent=5 // pred_region
        %s145 = ssub.s32 %s12, 1
        %p146 = scmp.lt.s32.totalorder %s17, 1
        %s147 = scalar_select %p146, %s17, 1
        %s148 = smul.addr %s147, 3
        %s149 = smul.addr %s148, 4
        %s150 = scalar_lea.vmem %s0, %s149
        %p151 = pneg %p38
        %p152 = pneg %p35
        %p153 = pneg %p59
        %p154 = pneg %p56
        %p155 = pneg %p80
        %p156 = pneg %p77
        %p157 = pneg %p106
        %p158 = pneg %p103
        %s159 = sand.u32 %s93, 1
        %s160 = scalar_lea.sflag [#allocation3], %s159
        %s161 = sand.u32 %s93, 1
        %s162 = smul.addr %s161, 24
        %s163 = scalar_lea.vmem [#allocation2], %s162
        %p164 = scmp.lt.s32.totalorder %s17, 1
        %s165 = scalar_select %p164, %s17, 1
        %s166 = smul.addr %s165, 3
        %s167 = smul.addr %s166, 4
        %s168 = scalar_lea.vmem %s0, %s167
        %v169 = vld [vmem:[%s1] sm:$0xff]
        %v170 = vld [vmem:[%s168] sm:$0xff]
        %v171 = vld [vmem:[%s168 + $0x8] sm:$0xf]
        %s172 = scalar_lea.vmem %s1, 8
        %v173 = vld [vmem:[%s172] sm:$0xff]
        %176 = vst [vmem:[#allocation1] ss:$2 sm:$0xff] %v170
        %s177 = scalar_lea.vmem [#allocation1], 16
        %178 = vst [vmem:[%s177] ss:$2 sm:$0xff] %v171
        %v179 = vld.sshfl [vmem:[#allocation1] sm:$0xff pattern:$0x75316420]
        %v180 = vld.sshfl [vmem:[#allocation1 + $0x8] sm:$0xff pattern:$0x75316420]
        %v181 = vld.sshfl [vmem:[#allocation1 + $0x10] sm:$0xff pattern:$0x75316420]
        %182 = vrot.lane.b32.xlu0 %v179, 127
        %v183 = vpop.permute.xlu0 %182
        %184 = vrot.lane.b32.xlu0 %v180, 127
        %v185 = vpop.permute.xlu0 %184
        %186 = vrot.lane.b32.xlu0 %v181, 127
        %v187 = vpop.permute.xlu0 %186
        %vm188 = vcmask 1039360
        %v189 = vsel %vm188, %v183, %v185
        %v190 = vsel %vm188, %v185, %v187
        %vm191 = vcmask 31744
        %v193 = vsel %vm191, %v173, 0
        %vm195 = vcmask 1043456
        %v196 = vsel %vm195, %v189, 0
        %v198 = vsel %vm195, %v190, 0
        %v200 = vsel %vm195, %v187, 0
        %202 = vmatpush.msra.mxu0 0.0
        %203 = vmatpush.msra.mxu0 0.0
        %204 = vmatpush.msra.mxu0 0.0
        %205 = vmatpush.msra.mxu0 0.0
        %206 = vmatpush.msra.mxu0 0.0
        %207 = vmatpush.msra.mxu0 0.0
        %208 = vmatpush.msra.mxu0 0.0
        %209 = vmatpush.msra.mxu0 0.0
        %210 = vmatpush.msra.mxu0 0.0
        %211 = vmatpush.msra.mxu0 0.0
        %212 = vmatpush.msra.mxu0 0.0
        %213 = vmatpush.msra.mxu0 0.0
        %214 = vmatpush.msra.mxu0 0.0
        %215 = vmatpush.msra.mxu0 0.0
        %216 = vmatpush.msra.mxu0 0.0
        %217 = vmatpush.msra.mxu0 %v196
        %218 = vmatmul.f32.gmra.mxu0 %v193
        %v219 = vpop.f32.mrf.mxu0
        %v220 = vadd.f32 0.0, %v219
        %221 = vdwg.mxu0
        %222 = vmatpush.msra.mxu0 0.0
        %223 = vmatpush.msra.mxu0 0.0
        %224 = vmatpush.msra.mxu0 0.0
        %225 = vmatpush.msra.mxu0 0.0
        %226 = vmatpush.msra.mxu0 0.0
        %227 = vmatpush.msra.mxu0 0.0
        %228 = vmatpush.msra.mxu0 0.0
        %229 = vmatpush.msra.mxu0 0.0
        %230 = vmatpush.msra.mxu0 0.0
        %231 = vmatpush.msra.mxu0 0.0
        %232 = vmatpush.msra.mxu0 0.0
        %233 = vmatpush.msra.mxu0 0.0
        %234 = vmatpush.msra.mxu0 0.0
        %235 = vmatpush.msra.mxu0 0.0
        %236 = vmatpush.msra.mxu0 0.0
        %237 = vmatpush.msra.mxu0 %v198
        %238 = vmatmul.f32.gmra.mxu0 %v193
        %v239 = vpop.f32.mrf.mxu0
        %v240 = vadd.f32 0.0, %v239
        %241 = vdwg.mxu0
        %242 = vmatpush.msra.mxu0 0.0
        %243 = vmatpush.msra.mxu0 0.0
        %244 = vmatpush.msra.mxu0 0.0
        %245 = vmatpush.msra.mxu0 0.0
        %246 = vmatpush.msra.mxu0 0.0
        %247 = vmatpush.msra.mxu0 0.0
        %248 = vmatpush.msra.mxu0 0.0
        %249 = vmatpush.msra.mxu0 0.0
        %250 = vmatpush.msra.mxu0 0.0
        %251 = vmatpush.msra.mxu0 0.0
        %252 = vmatpush.msra.mxu0 0.0
        %253 = vmatpush.msra.mxu0 0.0
        %254 = vmatpush.msra.mxu0 0.0
        %255 = vmatpush.msra.mxu0 0.0
        %256 = vmatpush.msra.mxu0 0.0
        %257 = vmatpush.msra.mxu0 %v200
        %258 = vmatmul.f32.gmra.mxu0 %v193
        %v259 = vpop.f32.mrf.mxu0
        %v260 = vadd.f32 0.0, %v259
        %261 = vdwg.mxu0
        %262 = vst [vmem:[#allocation1] ss:$2 sm:$0xff] %v170
        %s263 = scalar_lea.vmem [#allocation1], 16
        %264 = vst [vmem:[%s263] ss:$2 sm:$0xff] %v171
        %v265 = vld.sshfl [vmem:[#allocation1] sm:$0xff pattern:$0x75316420]
        %v266 = vld.sshfl [vmem:[#allocation1 + $0x8] sm:$0xff pattern:$0x75316420]
        %v267 = vld.sshfl [vmem:[#allocation1 + $0x10] sm:$0xff pattern:$0x75316420]
        %v269 = vsel %vm191, %v169, 0
        %v271 = vsel %vm195, %v265, 0
        %v273 = vsel %vm195, %v266, 0
        %v275 = vsel %vm195, %v267, 0
        %277 = vmatpush.msra.mxu0 0.0
        %278 = vmatpush.msra.mxu0 0.0
        %279 = vmatpush.msra.mxu0 0.0
        %280 = vmatpush.msra.mxu0 0.0
        %281 = vmatpush.msra.mxu0 0.0
        %282 = vmatpush.msra.mxu0 0.0
        %283 = vmatpush.msra.mxu0 0.0
        %284 = vmatpush.msra.mxu0 0.0
        %285 = vmatpush.msra.mxu0 0.0
        %286 = vmatpush.msra.mxu0 0.0
        %287 = vmatpush.msra.mxu0 0.0
        %288 = vmatpush.msra.mxu0 0.0
        %289 = vmatpush.msra.mxu0 0.0
        %290 = vmatpush.msra.mxu0 0.0
        %291 = vmatpush.msra.mxu0 0.0
        %292 = vmatpush.msra.mxu0 %v271
        %293 = vmatmul.f32.gmra.mxu0 %v269
        %v294 = vpop.f32.mrf.mxu0
        %v295 = vadd.f32 %v220, %v294
        %296 = vdwg.mxu0
        %297 = vmatpush.msra.mxu0 0.0
        %298 = vmatpush.msra.mxu0 0.0
        %299 = vmatpush.msra.mxu0 0.0
        %300 = vmatpush.msra.mxu0 0.0
        %301 = vmatpush.msra.mxu0 0.0
        %302 = vmatpush.msra.mxu0 0.0
        %303 = vmatpush.msra.mxu0 0.0
        %304 = vmatpush.msra.mxu0 0.0
        %305 = vmatpush.msra.mxu0 0.0
        %306 = vmatpush.msra.mxu0 0.0
        %307 = vmatpush.msra.mxu0 0.0
        %308 = vmatpush.msra.mxu0 0.0
        %309 = vmatpush.msra.mxu0 0.0
        %310 = vmatpush.msra.mxu0 0.0
        %311 = vmatpush.msra.mxu0 0.0
        %312 = vmatpush.msra.mxu0 %v273
        %313 = vmatmul.f32.gmra.mxu0 %v269
        %v314 = vpop.f32.mrf.mxu0
        %v315 = vadd.f32 %v240, %v314
        %316 = vdwg.mxu0
        %317 = vmatpush.msra.mxu0 0.0
        %318 = vmatpush.msra.mxu0 0.0
        %319 = vmatpush.msra.mxu0 0.0
        %320 = vmatpush.msra.mxu0 0.0
        %321 = vmatpush.msra.mxu0 0.0
        %322 = vmatpush.msra.mxu0 0.0
        %323 = vmatpush.msra.mxu0 0.0
        %324 = vmatpush.msra.mxu0 0.0
        %325 = vmatpush.msra.mxu0 0.0
        %326 = vmatpush.msra.mxu0 0.0
        %327 = vmatpush.msra.mxu0 0.0
        %328 = vmatpush.msra.mxu0 0.0
        %329 = vmatpush.msra.mxu0 0.0
        %330 = vmatpush.msra.mxu0 0.0
        %331 = vmatpush.msra.mxu0 0.0
        %332 = vmatpush.msra.mxu0 %v275
        %333 = vmatmul.f32.gmra.mxu0 %v269
        %v334 = vpop.f32.mrf.mxu0
        %v335 = vadd.f32 %v260, %v334
        %336 = vdwg.mxu0
        %s337 = scalar_lea.vmem %s1, 16
        %v338 = vld [vmem:[%s337] sm:$0xff]
        %v339 = vld [vmem:[%s168] sm:$0xff]
        %v340 = vld [vmem:[%s168 + $0x8] sm:$0xf]
        %343 = vst [vmem:[#allocation1] ss:$2 sm:$0xff] %v339
        %s344 = scalar_lea.vmem [#allocation1], 16
        %345 = vst [vmem:[%s344] ss:$2 sm:$0xff] %v340
        %v346 = vld.sshfl [vmem:[#allocation1] sm:$0xff pattern:$0x75316420]
        %v347 = vld.sshfl [vmem:[#allocation1 + $0x8] sm:$0xff pattern:$0x75316420]
        %v348 = vld.sshfl [vmem:[#allocation1 + $0x10] sm:$0xff pattern:$0x75316420]
        %349 = vrot.lane.b32.xlu0 %v346, 126
        %v350 = vpop.permute.xlu0 %349
        %351 = vrot.lane.b32.xlu0 %v347, 126
        %v352 = vpop.permute.xlu0 %351
        %353 = vrot.lane.b32.xlu0 %v348, 126
        %v354 = vpop.permute.xlu0 %353
        %vm355 = vcmask 1031168
        %v356 = vsel %vm355, %v350, %v352
        %v357 = vsel %vm355, %v352, %v354
        %v359 = vsel %vm191, %v338, 0
        %v361 = vsel %vm195, %v356, 0
        %v363 = vsel %vm195, %v357, 0
        %v365 = vsel %vm195, %v354, 0
        %367 = vmatpush.msra.mxu0 0.0
        %368 = vmatpush.msra.mxu0 0.0
        %369 = vmatpush.msra.mxu0 0.0
        %370 = vmatpush.msra.mxu0 0.0
        %371 = vmatpush.msra.mxu0 0.0
        %372 = vmatpush.msra.mxu0 0.0
        %373 = vmatpush.msra.mxu0 0.0
        %374 = vmatpush.msra.mxu0 0.0
        %375 = vmatpush.msra.mxu0 0.0
        %376 = vmatpush.msra.mxu0 0.0
        %377 = vmatpush.msra.mxu0 0.0
        %378 = vmatpush.msra.mxu0 0.0
        %379 = vmatpush.msra.mxu0 0.0
        %380 = vmatpush.msra.mxu0 0.0
        %381 = vmatpush.msra.mxu0 0.0
        %382 = vmatpush.msra.mxu0 %v361
        %383 = vmatmul.f32.gmra.mxu0 %v359
        %v384 = vpop.f32.mrf.mxu0
        %v385 = vadd.f32 0.0, %v384
        %386 = vdwg.mxu0
        %387 = vmatpush.msra.mxu0 0.0
        %388 = vmatpush.msra.mxu0 0.0
        %389 = vmatpush.msra.mxu0 0.0
        %390 = vmatpush.msra.mxu0 0.0
        %391 = vmatpush.msra.mxu0 0.0
        %392 = vmatpush.msra.mxu0 0.0
        %393 = vmatpush.msra.mxu0 0.0
        %394 = vmatpush.msra.mxu0 0.0
        %395 = vmatpush.msra.mxu0 0.0
        %396 = vmatpush.msra.mxu0 0.0
        %397 = vmatpush.msra.mxu0 0.0
        %398 = vmatpush.msra.mxu0 0.0
        %399 = vmatpush.msra.mxu0 0.0
        %400 = vmatpush.msra.mxu0 0.0
        %401 = vmatpush.msra.mxu0 0.0
        %402 = vmatpush.msra.mxu0 %v363
        %403 = vmatmul.f32.gmra.mxu0 %v359
        %v404 = vpop.f32.mrf.mxu0
        %v405 = vadd.f32 0.0, %v404
        %406 = vdwg.mxu0
        %407 = vmatpush.msra.mxu0 0.0
        %408 = vmatpush.msra.mxu0 0.0
        %409 = vmatpush.msra.mxu0 0.0
        %410 = vmatpush.msra.mxu0 0.0
        %411 = vmatpush.msra.mxu0 0.0
        %412 = vmatpush.msra.mxu0 0.0
        %413 = vmatpush.msra.mxu0 0.0
        %414 = vmatpush.msra.mxu0 0.0
        %415 = vmatpush.msra.mxu0 0.0
        %416 = vmatpush.msra.mxu0 0.0
        %417 = vmatpush.msra.mxu0 0.0
        %418 = vmatpush.msra.mxu0 0.0
        %419 = vmatpush.msra.mxu0 0.0
        %420 = vmatpush.msra.mxu0 0.0
        %421 = vmatpush.msra.mxu0 0.0
        %422 = vmatpush.msra.mxu0 %v365
        %423 = vmatmul.f32.gmra.mxu0 %v359
        %v424 = vpop.f32.mrf.mxu0
        %v425 = vadd.f32 0.0, %v424
        %426 = vdwg.mxu0
        %v427 = vadd.f32 %v295, %v385
        %v428 = vadd.f32 %v315, %v405
        %v429 = vadd.f32 %v335, %v425
        %s430 = scalar_lea.vmem %s1, 24
        %v431 = vld [vmem:[%s430] sm:$0xff]
        %v432 = vld [vmem:[%s168] sm:$0xff]
        %v433 = vld [vmem:[%s168 + $0x8] sm:$0xf]
        %436 = vst [vmem:[#allocation1] ss:$2 sm:$0xff] %v432
        %s437 = scalar_lea.vmem [#allocation1], 16
        %438 = vst [vmem:[%s437] ss:$2 sm:$0xff] %v433
        %v439 = vld.sshfl [vmem:[#allocation1] sm:$0xff pattern:$0x75316420]
        %v440 = vld.sshfl [vmem:[#allocation1 + $0x8] sm:$0xff pattern:$0x75316420]
        %v441 = vld.sshfl [vmem:[#allocation1 + $0x10] sm:$0xff pattern:$0x75316420]
        %442 = vrot.lane.b32.xlu0 %v439, 110
        %v443 = vpop.permute.xlu0 %442
        %444 = vrot.lane.b32.xlu0 %v440, 110
        %v445 = vpop.permute.xlu0 %444
        %446 = vrot.lane.b32.xlu0 %v441, 110
        %v447 = vpop.permute.xlu0 %446
        %vm448 = vcmask 900096
        %v449 = vsel %vm448, %v443, %v445
        %v450 = vsel %vm448, %v445, %v447
        %v452 = vsel %vm191, %v431, 0
        %v454 = vsel %vm195, %v449, 0
        %v456 = vsel %vm195, %v450, 0
        %v458 = vsel %vm195, %v447, 0
        %460 = vmatpush.msra.mxu0 0.0
        %461 = vmatpush.msra.mxu0 0.0
        %462 = vmatpush.msra.mxu0 0.0
        %463 = vmatpush.msra.mxu0 0.0
        %464 = vmatpush.msra.mxu0 0.0
        %465 = vmatpush.msra.mxu0 0.0
        %466 = vmatpush.msra.mxu0 0.0
        %467 = vmatpush.msra.mxu0 0.0
        %468 = vmatpush.msra.mxu0 0.0
        %469 = vmatpush.msra.mxu0 0.0
        %470 = vmatpush.msra.mxu0 0.0
        %471 = vmatpush.msra.mxu0 0.0
        %472 = vmatpush.msra.mxu0 0.0
        %473 = vmatpush.msra.mxu0 0.0
        %474 = vmatpush.msra.mxu0 0.0
        %475 = vmatpush.msra.mxu0 %v454
        %476 = vmatmul.f32.gmra.mxu0 %v452
        %v477 = vpop.f32.mrf.mxu0
        %v478 = vadd.f32 0.0, %v477
        %479 = vdwg.mxu0
        %480 = vmatpush.msra.mxu0 0.0
        %481 = vmatpush.msra.mxu0 0.0
        %482 = vmatpush.msra.mxu0 0.0
        %483 = vmatpush.msra.mxu0 0.0
        %484 = vmatpush.msra.mxu0 0.0
        %485 = vmatpush.msra.mxu0 0.0
        %486 = vmatpush.msra.mxu0 0.0
        %487 = vmatpush.msra.mxu0 0.0
        %488 = vmatpush.msra.mxu0 0.0
        %489 = vmatpush.msra.mxu0 0.0
        %490 = vmatpush.msra.mxu0 0.0
        %491 = vmatpush.msra.mxu0 0.0
        %492 = vmatpush.msra.mxu0 0.0
        %493 = vmatpush.msra.mxu0 0.0
        %494 = vmatpush.msra.mxu0 0.0
        %495 = vmatpush.msra.mxu0 %v456
        %496 = vmatmul.f32.gmra.mxu0 %v452
        %v497 = vpop.f32.mrf.mxu0
        %v498 = vadd.f32 0.0, %v497
        %499 = vdwg.mxu0
        %500 = vmatpush.msra.mxu0 0.0
        %501 = vmatpush.msra.mxu0 0.0
        %502 = vmatpush.msra.mxu0 0.0
        %503 = vmatpush.msra.mxu0 0.0
        %504 = vmatpush.msra.mxu0 0.0
        %505 = vmatpush.msra.mxu0 0.0
        %506 = vmatpush.msra.mxu0 0.0
        %507 = vmatpush.msra.mxu0 0.0
        %508 = vmatpush.msra.mxu0 0.0
        %509 = vmatpush.msra.mxu0 0.0
        %510 = vmatpush.msra.mxu0 0.0
        %511 = vmatpush.msra.mxu0 0.0
        %512 = vmatpush.msra.mxu0 0.0
        %513 = vmatpush.msra.mxu0 0.0
        %514 = vmatpush.msra.mxu0 0.0
        %515 = vmatpush.msra.mxu0 %v458
        %516 = vmatmul.f32.gmra.mxu0 %v452
        %v517 = vpop.f32.mrf.mxu0
        %v518 = vadd.f32 0.0, %v517
        %519 = vdwg.mxu0
        %v520 = vadd.f32 %v427, %v478
        %v521 = vadd.f32 %v428, %v498
        %v522 = vadd.f32 %v429, %v518
        %s523 = scalar_lea.vmem %s1, 32
        %v524 = vld [vmem:[%s523] sm:$0xff]
        %v525 = vld [vmem:[%s168] sm:$0xff]
        %v526 = vld [vmem:[%s168 + $0x8] sm:$0xf]
        %529 = vst [vmem:[#allocation1] ss:$2 sm:$0xff] %v525
        %s530 = scalar_lea.vmem [#allocation1], 16
        %531 = vst [vmem:[%s530] ss:$2 sm:$0xff] %v526
        %v532 = vld.sshfl [vmem:[#allocation1] sm:$0xff pattern:$0x75316420]
        %v533 = vld.sshfl [vmem:[#allocation1 + $0x8] sm:$0xff pattern:$0x75316420]
        %v534 = vld.sshfl [vmem:[#allocation1 + $0x10] sm:$0xff pattern:$0x75316420]
        %535 = vrot.lane.b32.xlu0 %v532, 109
        %v536 = vpop.permute.xlu0 %535
        %537 = vrot.lane.b32.xlu0 %v533, 109
        %v538 = vpop.permute.xlu0 %537
        %539 = vrot.lane.b32.xlu0 %v534, 109
        %v540 = vpop.permute.xlu0 %539
        %vm541 = vcmask 891904
        %v542 = vsel %vm541, %v536, %v538
        %v543 = vsel %vm541, %v538, %v540
        %v545 = vsel %vm191, %v524, 0
        %v547 = vsel %vm195, %v542, 0
        %v549 = vsel %vm195, %v543, 0
        %v551 = vsel %vm195, %v540, 0
        %553 = vmatpush.msra.mxu0 0.0
        %554 = vmatpush.msra.mxu0 0.0
        %555 = vmatpush.msra.mxu0 0.0
        %556 = vmatpush.msra.mxu0 0.0
        %557 = vmatpush.msra.mxu0 0.0
        %558 = vmatpush.msra.mxu0 0.0
        %559 = vmatpush.msra.mxu0 0.0
        %560 = vmatpush.msra.mxu0 0.0
        %561 = vmatpush.msra.mxu0 0.0
        %562 = vmatpush.msra.mxu0 0.0
        %563 = vmatpush.msra.mxu0 0.0
        %564 = vmatpush.msra.mxu0 0.0
        %565 = vmatpush.msra.mxu0 0.0
        %566 = vmatpush.msra.mxu0 0.0
        %567 = vmatpush.msra.mxu0 0.0
        %568 = vmatpush.msra.mxu0 %v547
        %569 = vmatmul.f32.gmra.mxu0 %v545
        %v570 = vpop.f32.mrf.mxu0
        %v571 = vadd.f32 0.0, %v570
        %572 = vdwg.mxu0
        %573 = vmatpush.msra.mxu0 0.0
        %574 = vmatpush.msra.mxu0 0.0
        %575 = vmatpush.msra.mxu0 0.0
        %576 = vmatpush.msra.mxu0 0.0
        %577 = vmatpush.msra.mxu0 0.0
        %578 = vmatpush.msra.mxu0 0.0
        %579 = vmatpush.msra.mxu0 0.0
        %580 = vmatpush.msra.mxu0 0.0
        %581 = vmatpush.msra.mxu0 0.0
        %582 = vmatpush.msra.mxu0 0.0
        %583 = vmatpush.msra.mxu0 0.0
        %584 = vmatpush.msra.mxu0 0.0
        %585 = vmatpush.msra.mxu0 0.0
        %586 = vmatpush.msra.mxu0 0.0
        %587 = vmatpush.msra.mxu0 0.0
        %588 = vmatpush.msra.mxu0 %v549
        %589 = vmatmul.f32.gmra.mxu0 %v545
        %v590 = vpop.f32.mrf.mxu0
        %v591 = vadd.f32 0.0, %v590
        %592 = vdwg.mxu0
        %593 = vmatpush.msra.mxu0 0.0
        %594 = vmatpush.msra.mxu0 0.0
        %595 = vmatpush.msra.mxu0 0.0
        %596 = vmatpush.msra.mxu0 0.0
        %597 = vmatpush.msra.mxu0 0.0
        %598 = vmatpush.msra.mxu0 0.0
        %599 = vmatpush.msra.mxu0 0.0
        %600 = vmatpush.msra.mxu0 0.0
        %601 = vmatpush.msra.mxu0 0.0
        %602 = vmatpush.msra.mxu0 0.0
        %603 = vmatpush.msra.mxu0 0.0
        %604 = vmatpush.msra.mxu0 0.0
        %605 = vmatpush.msra.mxu0 0.0
        %606 = vmatpush.msra.mxu0 0.0
        %607 = vmatpush.msra.mxu0 0.0
        %608 = vmatpush.msra.mxu0 %v551
        %609 = vmatmul.f32.gmra.mxu0 %v545
        %v610 = vpop.f32.mrf.mxu0
        %v611 = vadd.f32 0.0, %v610
        %612 = vdwg.mxu0
        %v613 = vadd.f32 %v520, %v571
        %v614 = vadd.f32 %v521, %v591
        %v615 = vadd.f32 %v522, %v611
        %s616 = scalar_lea.vmem %s1, 40
        %v617 = vld [vmem:[%s616] sm:$0xff]
        %v618 = vld [vmem:[%s168] sm:$0xff]
        %v619 = vld [vmem:[%s168 + $0x8] sm:$0xf]
        %622 = vst [vmem:[#allocation1] ss:$2 sm:$0xff] %v618
        %s623 = scalar_lea.vmem [#allocation1], 16
        %624 = vst [vmem:[%s623] ss:$2 sm:$0xff] %v619
        %v625 = vld.sshfl [vmem:[#allocation1] sm:$0xff pattern:$0x75316420]
        %v626 = vld.sshfl [vmem:[#allocation1 + $0x8] sm:$0xff pattern:$0x75316420]
        %v627 = vld.sshfl [vmem:[#allocation1 + $0x10] sm:$0xff pattern:$0x75316420]
        %628 = vrot.lane.b32.xlu0 %v625, 108
        %v629 = vpop.permute.xlu0 %628
        %630 = vrot.lane.b32.xlu0 %v626, 108
        %v631 = vpop.permute.xlu0 %630
        %632 = vrot.lane.b32.xlu0 %v627, 108
        %v633 = vpop.permute.xlu0 %632
        %vm634 = vcmask 883712
        %v635 = vsel %vm634, %v629, %v631
        %v636 = vsel %vm634, %v631, %v633
        %v638 = vsel %vm191, %v617, 0
        %v640 = vsel %vm195, %v635, 0
        %v642 = vsel %vm195, %v636, 0
        %v644 = vsel %vm195, %v633, 0
        %646 = vmatpush.msra.mxu0 0.0
        %647 = vmatpush.msra.mxu0 0.0
        %648 = vmatpush.msra.mxu0 0.0
        %649 = vmatpush.msra.mxu0 0.0
        %650 = vmatpush.msra.mxu0 0.0
        %651 = vmatpush.msra.mxu0 0.0
        %652 = vmatpush.msra.mxu0 0.0
        %653 = vmatpush.msra.mxu0 0.0
        %654 = vmatpush.msra.mxu0 0.0
        %655 = vmatpush.msra.mxu0 0.0
        %656 = vmatpush.msra.mxu0 0.0
        %657 = vmatpush.msra.mxu0 0.0
        %658 = vmatpush.msra.mxu0 0.0
        %659 = vmatpush.msra.mxu0 0.0
        %660 = vmatpush.msra.mxu0 0.0
        %661 = vmatpush.msra.mxu0 %v640
        %662 = vmatmul.f32.gmra.mxu0 %v638
        %v663 = vpop.f32.mrf.mxu0
        %v664 = vadd.f32 0.0, %v663
        %665 = vdwg.mxu0
        %666 = vmatpush.msra.mxu0 0.0
        %667 = vmatpush.msra.mxu0 0.0
        %668 = vmatpush.msra.mxu0 0.0
        %669 = vmatpush.msra.mxu0 0.0
        %670 = vmatpush.msra.mxu0 0.0
        %671 = vmatpush.msra.mxu0 0.0
        %672 = vmatpush.msra.mxu0 0.0
        %673 = vmatpush.msra.mxu0 0.0
        %674 = vmatpush.msra.mxu0 0.0
        %675 = vmatpush.msra.mxu0 0.0
        %676 = vmatpush.msra.mxu0 0.0
        %677 = vmatpush.msra.mxu0 0.0
        %678 = vmatpush.msra.mxu0 0.0
        %679 = vmatpush.msra.mxu0 0.0
        %680 = vmatpush.msra.mxu0 0.0
        %681 = vmatpush.msra.mxu0 %v642
        %682 = vmatmul.f32.gmra.mxu0 %v638
        %v683 = vpop.f32.mrf.mxu0
        %v684 = vadd.f32 0.0, %v683
        %685 = vdwg.mxu0
        %686 = vmatpush.msra.mxu0 0.0
        %687 = vmatpush.msra.mxu0 0.0
        %688 = vmatpush.msra.mxu0 0.0
        %689 = vmatpush.msra.mxu0 0.0
        %690 = vmatpush.msra.mxu0 0.0
        %691 = vmatpush.msra.mxu0 0.0
        %692 = vmatpush.msra.mxu0 0.0
        %693 = vmatpush.msra.mxu0 0.0
        %694 = vmatpush.msra.mxu0 0.0
        %695 = vmatpush.msra.mxu0 0.0
        %696 = vmatpush.msra.mxu0 0.0
        %697 = vmatpush.msra.mxu0 0.0
        %698 = vmatpush.msra.mxu0 0.0
        %699 = vmatpush.msra.mxu0 0.0
        %700 = vmatpush.msra.mxu0 0.0
        %701 = vmatpush.msra.mxu0 %v644
        %702 = vmatmul.f32.gmra.mxu0 %v638
        %v703 = vpop.f32.mrf.mxu0
        %v704 = vadd.f32 0.0, %v703
        %705 = vdwg.mxu0
        %v706 = vadd.f32 %v613, %v664
        %v707 = vadd.f32 %v614, %v684
        %v708 = vadd.f32 %v615, %v704
        %s709 = scalar_lea.vmem %s1, 48
        %v710 = vld [vmem:[%s709] sm:$0xff]
        %v711 = vld [vmem:[%s168] sm:$0xff]
        %v712 = vld [vmem:[%s168 + $0x8] sm:$0xf]
        %715 = vst [vmem:[#allocation1] ss:$2 sm:$0xff] %v711
        %s716 = scalar_lea.vmem [#allocation1], 16
        %717 = vst [vmem:[%s716] ss:$2 sm:$0xff] %v712
        %v718 = vld.sshfl [vmem:[#allocation1] sm:$0xff pattern:$0x75316420]
        %v719 = vld.sshfl [vmem:[#allocation1 + $0x8] sm:$0xff pattern:$0x75316420]
        %v720 = vld.sshfl [vmem:[#allocation1 + $0x10] sm:$0xff pattern:$0x75316420]
        %721 = vrot.lane.b32.xlu0 %v718, 92
        %v722 = vpop.permute.xlu0 %721
        %723 = vrot.lane.b32.xlu0 %v719, 92
        %v724 = vpop.permute.xlu0 %723
        %725 = vrot.lane.b32.xlu0 %v720, 92
        %v726 = vpop.permute.xlu0 %725
        %vm727 = vcmask 752640
        %v728 = vsel %vm727, %v722, %v724
        %v729 = vsel %vm727, %v724, %v726
        %v731 = vsel %vm191, %v710, 0
        %v733 = vsel %vm195, %v728, 0
        %v735 = vsel %vm195, %v729, 0
        %v737 = vsel %vm195, %v726, 0
        %739 = vmatpush.msra.mxu0 0.0
        %740 = vmatpush.msra.mxu0 0.0
        %741 = vmatpush.msra.mxu0 0.0
        %742 = vmatpush.msra.mxu0 0.0
        %743 = vmatpush.msra.mxu0 0.0
        %744 = vmatpush.msra.mxu0 0.0
        %745 = vmatpush.msra.mxu0 0.0
        %746 = vmatpush.msra.mxu0 0.0
        %747 = vmatpush.msra.mxu0 0.0
        %748 = vmatpush.msra.mxu0 0.0
        %749 = vmatpush.msra.mxu0 0.0
        %750 = vmatpush.msra.mxu0 0.0
        %751 = vmatpush.msra.mxu0 0.0
        %752 = vmatpush.msra.mxu0 0.0
        %753 = vmatpush.msra.mxu0 0.0
        %754 = vmatpush.msra.mxu0 %v733
        %755 = vmatmul.f32.gmra.mxu0 %v731
        %v756 = vpop.f32.mrf.mxu0
        %v757 = vadd.f32 0.0, %v756
        %758 = vdwg.mxu0
        %759 = vmatpush.msra.mxu0 0.0
        %760 = vmatpush.msra.mxu0 0.0
        %761 = vmatpush.msra.mxu0 0.0
        %762 = vmatpush.msra.mxu0 0.0
        %763 = vmatpush.msra.mxu0 0.0
        %764 = vmatpush.msra.mxu0 0.0
        %765 = vmatpush.msra.mxu0 0.0
        %766 = vmatpush.msra.mxu0 0.0
        %767 = vmatpush.msra.mxu0 0.0
        %768 = vmatpush.msra.mxu0 0.0
        %769 = vmatpush.msra.mxu0 0.0
        %770 = vmatpush.msra.mxu0 0.0
        %771 = vmatpush.msra.mxu0 0.0
        %772 = vmatpush.msra.mxu0 0.0
        %773 = vmatpush.msra.mxu0 0.0
        %774 = vmatpush.msra.mxu0 %v735
        %775 = vmatmul.f32.gmra.mxu0 %v731
        %v776 = vpop.f32.mrf.mxu0
        %v777 = vadd.f32 0.0, %v776
        %778 = vdwg.mxu0
        %779 = vmatpush.msra.mxu0 0.0
        %780 = vmatpush.msra.mxu0 0.0
        %781 = vmatpush.msra.mxu0 0.0
        %782 = vmatpush.msra.mxu0 0.0
        %783 = vmatpush.msra.mxu0 0.0
        %784 = vmatpush.msra.mxu0 0.0
        %785 = vmatpush.msra.mxu0 0.0
        %786 = vmatpush.msra.mxu0 0.0
        %787 = vmatpush.msra.mxu0 0.0
        %788 = vmatpush.msra.mxu0 0.0
        %789 = vmatpush.msra.mxu0 0.0
        %790 = vmatpush.msra.mxu0 0.0
        %791 = vmatpush.msra.mxu0 0.0
        %792 = vmatpush.msra.mxu0 0.0
        %793 = vmatpush.msra.mxu0 0.0
        %794 = vmatpush.msra.mxu0 %v737
        %795 = vmatmul.f32.gmra.mxu0 %v731
        %v796 = vpop.f32.mrf.mxu0
        %v797 = vadd.f32 0.0, %v796
        %798 = vdwg.mxu0
        %v799 = vadd.f32 %v706, %v757
        %v800 = vadd.f32 %v707, %v777
        %v801 = vadd.f32 %v708, %v797
        %s802 = scalar_lea.vmem %s1, 56
        %v803 = vld [vmem:[%s802] sm:$0xff]
        %v804 = vld [vmem:[%s168] sm:$0xff]
        %v805 = vld [vmem:[%s168 + $0x8] sm:$0xf]
        %808 = vst [vmem:[#allocation1] ss:$2 sm:$0xff] %v804
        %s809 = scalar_lea.vmem [#allocation1], 16
        %810 = vst [vmem:[%s809] ss:$2 sm:$0xff] %v805
        %v811 = vld.sshfl [vmem:[#allocation1] sm:$0xff pattern:$0x75316420]
        %v812 = vld.sshfl [vmem:[#allocation1 + $0x8] sm:$0xff pattern:$0x75316420]
        %v813 = vld.sshfl [vmem:[#allocation1 + $0x10] sm:$0xff pattern:$0x75316420]
        %814 = vrot.lane.b32.xlu0 %v811, 91
        %v815 = vpop.permute.xlu0 %814
        %816 = vrot.lane.b32.xlu0 %v812, 91
        %v817 = vpop.permute.xlu0 %816
        %818 = vrot.lane.b32.xlu0 %v813, 91
        %v819 = vpop.permute.xlu0 %818
        %vm820 = vcmask 744448
        %v821 = vsel %vm820, %v815, %v817
        %v822 = vsel %vm820, %v817, %v819
        %v824 = vsel %vm191, %v803, 0
        %v826 = vsel %vm195, %v821, 0
        %v828 = vsel %vm195, %v822, 0
        %v830 = vsel %vm195, %v819, 0
        %832 = vmatpush.msra.mxu0 0.0
        %833 = vmatpush.msra.mxu0 0.0
        %834 = vmatpush.msra.mxu0 0.0
        %835 = vmatpush.msra.mxu0 0.0
        %836 = vmatpush.msra.mxu0 0.0
        %837 = vmatpush.msra.mxu0 0.0
        %838 = vmatpush.msra.mxu0 0.0
        %839 = vmatpush.msra.mxu0 0.0
        %840 = vmatpush.msra.mxu0 0.0
        %841 = vmatpush.msra.mxu0 0.0
        %842 = vmatpush.msra.mxu0 0.0
        %843 = vmatpush.msra.mxu0 0.0
        %844 = vmatpush.msra.mxu0 0.0
        %845 = vmatpush.msra.mxu0 0.0
        %846 = vmatpush.msra.mxu0 0.0
        %847 = vmatpush.msra.mxu0 %v826
        %848 = vmatmul.f32.gmra.mxu0 %v824
        %v849 = vpop.f32.mrf.mxu0
        %v850 = vadd.f32 0.0, %v849
        %851 = vdwg.mxu0
        %852 = vmatpush.msra.mxu0 0.0
        %853 = vmatpush.msra.mxu0 0.0
        %854 = vmatpush.msra.mxu0 0.0
        %855 = vmatpush.msra.mxu0 0.0
        %856 = vmatpush.msra.mxu0 0.0
        %857 = vmatpush.msra.mxu0 0.0
        %858 = vmatpush.msra.mxu0 0.0
        %859 = vmatpush.msra.mxu0 0.0
        %860 = vmatpush.msra.mxu0 0.0
        %861 = vmatpush.msra.mxu0 0.0
        %862 = vmatpush.msra.mxu0 0.0
        %863 = vmatpush.msra.mxu0 0.0
        %864 = vmatpush.msra.mxu0 0.0
        %865 = vmatpush.msra.mxu0 0.0
        %866 = vmatpush.msra.mxu0 0.0
        %867 = vmatpush.msra.mxu0 %v828
        %868 = vmatmul.f32.gmra.mxu0 %v824
        %v869 = vpop.f32.mrf.mxu0
        %v870 = vadd.f32 0.0, %v869
        %871 = vdwg.mxu0
        %872 = vmatpush.msra.mxu0 0.0
        %873 = vmatpush.msra.mxu0 0.0
        %874 = vmatpush.msra.mxu0 0.0
        %875 = vmatpush.msra.mxu0 0.0
        %876 = vmatpush.msra.mxu0 0.0
        %877 = vmatpush.msra.mxu0 0.0
        %878 = vmatpush.msra.mxu0 0.0
        %879 = vmatpush.msra.mxu0 0.0
        %880 = vmatpush.msra.mxu0 0.0
        %881 = vmatpush.msra.mxu0 0.0
        %882 = vmatpush.msra.mxu0 0.0
        %883 = vmatpush.msra.mxu0 0.0
        %884 = vmatpush.msra.mxu0 0.0
        %885 = vmatpush.msra.mxu0 0.0
        %886 = vmatpush.msra.mxu0 0.0
        %887 = vmatpush.msra.mxu0 %v830
        %888 = vmatmul.f32.gmra.mxu0 %v824
        %v889 = vpop.f32.mrf.mxu0
        %v890 = vadd.f32 0.0, %v889
        %891 = vdwg.mxu0
        %v892 = vadd.f32 %v799, %v850
        %v893 = vadd.f32 %v800, %v870
        %v894 = vadd.f32 %v801, %v890
        %s895 = scalar_lea.vmem %s1, 64
        %v896 = vld [vmem:[%s895] sm:$0xff]
        %v897 = vld [vmem:[%s168] sm:$0xff]
        %v898 = vld [vmem:[%s168 + $0x8] sm:$0xf]
        %901 = vst [vmem:[#allocation1] ss:$2 sm:$0xff] %v897
        %s902 = scalar_lea.vmem [#allocation1], 16
        %903 = vst [vmem:[%s902] ss:$2 sm:$0xff] %v898
        %v904 = vld.sshfl [vmem:[#allocation1] sm:$0xff pattern:$0x75316420]
        %v905 = vld.sshfl [vmem:[#allocation1 + $0x8] sm:$0xff pattern:$0x75316420]
        %v906 = vld.sshfl [vmem:[#allocation1 + $0x10] sm:$0xff pattern:$0x75316420]
        %907 = vrot.lane.b32.xlu0 %v904, 90
        %v908 = vpop.permute.xlu0 %907
        %909 = vrot.lane.b32.xlu0 %v905, 90
        %v910 = vpop.permute.xlu0 %909
        %911 = vrot.lane.b32.xlu0 %v906, 90
        %v912 = vpop.permute.xlu0 %911
        %vm913 = vcmask 736256
        %v914 = vsel %vm913, %v908, %v910
        %v915 = vsel %vm913, %v910, %v912
        %v917 = vsel %vm191, %v896, 0
        %v919 = vsel %vm195, %v914, 0
        %v921 = vsel %vm195, %v915, 0
        %v923 = vsel %vm195, %v912, 0
        %925 = vmatpush.msra.mxu0 0.0
        %926 = vmatpush.msra.mxu0 0.0
        %927 = vmatpush.msra.mxu0 0.0
        %928 = vmatpush.msra.mxu0 0.0
        %929 = vmatpush.msra.mxu0 0.0
        %930 = vmatpush.msra.mxu0 0.0
        %931 = vmatpush.msra.mxu0 0.0
        %932 = vmatpush.msra.mxu0 0.0
        %933 = vmatpush.msra.mxu0 0.0
        %934 = vmatpush.msra.mxu0 0.0
        %935 = vmatpush.msra.mxu0 0.0
        %936 = vmatpush.msra.mxu0 0.0
        %937 = vmatpush.msra.mxu0 0.0
        %938 = vmatpush.msra.mxu0 0.0
        %939 = vmatpush.msra.mxu0 0.0
        %940 = vmatpush.msra.mxu0 %v919
        %941 = vmatmul.f32.gmra.mxu0 %v917
        %v942 = vpop.f32.mrf.mxu0
        %v943 = vadd.f32 0.0, %v942
        %944 = vdwg.mxu0
        %945 = vmatpush.msra.mxu0 0.0
        %946 = vmatpush.msra.mxu0 0.0
        %947 = vmatpush.msra.mxu0 0.0
        %948 = vmatpush.msra.mxu0 0.0
        %949 = vmatpush.msra.mxu0 0.0
        %950 = vmatpush.msra.mxu0 0.0
        %951 = vmatpush.msra.mxu0 0.0
        %952 = vmatpush.msra.mxu0 0.0
        %953 = vmatpush.msra.mxu0 0.0
        %954 = vmatpush.msra.mxu0 0.0
        %955 = vmatpush.msra.mxu0 0.0
        %956 = vmatpush.msra.mxu0 0.0
        %957 = vmatpush.msra.mxu0 0.0
        %958 = vmatpush.msra.mxu0 0.0
        %959 = vmatpush.msra.mxu0 0.0
        %960 = vmatpush.msra.mxu0 %v921
        %961 = vmatmul.f32.gmra.mxu0 %v917
        %v962 = vpop.f32.mrf.mxu0
        %v963 = vadd.f32 0.0, %v962
        %964 = vdwg.mxu0
        %965 = vmatpush.msra.mxu0 0.0
        %966 = vmatpush.msra.mxu0 0.0
        %967 = vmatpush.msra.mxu0 0.0
        %968 = vmatpush.msra.mxu0 0.0
        %969 = vmatpush.msra.mxu0 0.0
        %970 = vmatpush.msra.mxu0 0.0
        %971 = vmatpush.msra.mxu0 0.0
        %972 = vmatpush.msra.mxu0 0.0
        %973 = vmatpush.msra.mxu0 0.0
        %974 = vmatpush.msra.mxu0 0.0
        %975 = vmatpush.msra.mxu0 0.0
        %976 = vmatpush.msra.mxu0 0.0
        %977 = vmatpush.msra.mxu0 0.0
        %978 = vmatpush.msra.mxu0 0.0
        %979 = vmatpush.msra.mxu0 0.0
        %980 = vmatpush.msra.mxu0 %v923
        %981 = vmatmul.f32.gmra.mxu0 %v917
        %v982 = vpop.f32.mrf.mxu0
        %v983 = vadd.f32 0.0, %v982
        %984 = vdwg.mxu0
        %v985 = vadd.f32 %v892, %v943
        %v986 = vadd.f32 %v893, %v963
        %v987 = vadd.f32 %v894, %v983
        %v988 = vld [vmem:[%s2] sm:$0xff]
        %990 = vset.pattern.permute.xlu0 0
        %991 = vperm.xlu0 %990, %v988
        %v992 = vpop.permute.xlu0 %991
        %v994 = vadd.f32 %v985, %v992
        %v995 = vadd.f32 %v986, %v992
        %v996 = vadd.f32 %v987, %v992
        %v997 = vsub.f32 0.0, %v994
        %v998 = vsub.f32 0.0, %v995
        %v999 = vsub.f32 0.0, %v996
        %v1000 = vmul.f32 %v997, 1.442695
        %v1001 = vpow.pop %v1000
        %v1002 = vmul.f32 %v998, 1.442695
        %v1003 = vpow.pop %v1002
        %v1004 = vmul.f32 %v999, 1.442695
        %v1005 = vpow.pop %v1004
        %v1006 = vadd.f32 %v1001, 1.0
        %v1007 = vadd.f32 %v1003, 1.0
        %v1008 = vadd.f32 %v1005, 1.0
        %v1009 = vrcp.pop %v1006
        %v1010 = vmul.f32 %v1006, %v1009
        %v1011 = vsub.f32 1.0, %v1010
        %v1012 = vmul.f32 %v1009, %v1011
        %v1013 = vadd.f32 %v1009, %v1012
        %vm1014 = vweird.f32 %v1006
        %vm1015 = vweird.f32 %v1009
        %vm1016 = vmor %vm1014, %vm1015
        %v1017 = vsel %vm1016, %v1009, %v1013
        %v1018 = vand.u32 2147483647, %v1006
        %vm1019 = vcmp.eq.f32.partialorder %v1018, 8.507059e+37
        %v1020 = vand.u32 %v1006, 2147483648
        %v1021 = vor.u32 1.1754944e-38, %v1020
        %v1022 = vsel %vm1019, %v1021, %v1017
        %v1023 = vrcp.pop %v1007
        %v1024 = vmul.f32 %v1007, %v1023
        %v1025 = vsub.f32 1.0, %v1024
        %v1026 = vmul.f32 %v1023, %v1025
        %v1027 = vadd.f32 %v1023, %v1026
        %vm1028 = vweird.f32 %v1007
        %vm1029 = vweird.f32 %v1023
        %vm1030 = vmor %vm1028, %vm1029
        %v1031 = vsel %vm1030, %v1023, %v1027
        %v1032 = vand.u32 2147483647, %v1007
        %vm1033 = vcmp.eq.f32.partialorder %v1032, 8.507059e+37
        %v1034 = vand.u32 %v1007, 2147483648
        %v1035 = vor.u32 1.1754944e-38, %v1034
        %v1036 = vsel %vm1033, %v1035, %v1031
        %v1037 = vrcp.pop %v1008
        %v1038 = vmul.f32 %v1008, %v1037
        %v1039 = vsub.f32 1.0, %v1038
        %v1040 = vmul.f32 %v1037, %v1039
        %v1041 = vadd.f32 %v1037, %v1040
        %vm1042 = vweird.f32 %v1008
        %vm1043 = vweird.f32 %v1037
        %vm1044 = vmor %vm1042, %vm1043
        %v1045 = vsel %vm1044, %v1037, %v1041
        %v1046 = vand.u32 2147483647, %v1008
        %vm1047 = vcmp.eq.f32.partialorder %v1046, 8.507059e+37
        %v1048 = vand.u32 %v1008, 2147483648
        %v1049 = vor.u32 1.1754944e-38, %v1048
        %v1050 = vsel %vm1047, %v1049, %v1045
        %v1051 = vmul.f32 %v994, %v1022
        %v1052 = vmul.f32 %v995, %v1036
        %v1053 = vmul.f32 %v996, %v1050
        %1054 = vst [vmem:[%s163] sm:$0xff] %v1051
        %1055 = vst [vmem:[%s163 + $0x8] sm:$0xff] %v1052
        %vm1056 = vcmask 261120
        %1057 = vst.msk [vmem:[%s163 + $0x10] sm:$0xff] %vm1056, %v1053
        %s1058 = sand.u32 %s93, 1
        %s1059 = scalar_lea.sflag [#allocation3], %s1058
        %s1060 = sand.u32 %s93, 1
        %s1061 = smul.addr %s1060, 24
        %s1062 = scalar_lea.vmem [#allocation2], %s1061
        // Predicated region
        $region33: #{tpu_custom_call.1} parent=31 // pred_check
          %p1063 = pneg %p103
        $region34: #{tpu_custom_call.1} parent=31 // pred_check_branch
          %1065 = sbr.rel (%p1063) target = $region36
        $region35: #{tpu_custom_call.1} parent=31 // pred_region
          %1067 = vsyncadd %s1059, 0
          %s1068 = smul.addr %s17, 3
          %s1069 = smul.addr %s1068, 8
          %s1070 = scalar_lea.hbm %s3, %s1069
          %s1072 = sshll.u32 %s1062, 4
          %s1073 = int_to_ptr.vmem [resolvable:$true] %s1072
          %s1074 = sshll.u32 %s1070, 4
          %s1075 = int_to_ptr.hbm [resolvable:$true] %s1074
          %1077 = dma.vmem_to_hbm [thread:$0]  %s1073, 384, %s1075, %s1059
        $region36: #{tpu_custom_call.1} parent=31 // pred_fallthru
          _
      $region32: #{tpu_custom_call.1} parent=5 // pred_fallthru
        _
      %p1078 = scmp.le.s32.totalorder 2, %s12
      // Predicated region
      $region37: #{tpu_custom_call.1} parent=5 // pred_check
        %p1079 = pneg %p1078
      $region38: #{tpu_custom_call.1} parent=5 // pred_check_branch
        %1081 = sbr.rel (%p1079) target = $region40
      $region39: #{tpu_custom_call.1} parent=5 // pred_region
        %s1082 = ssub.s32 %s12, 2
        // Predicated region
        $region41: #{tpu_custom_call.1} parent=39 // pred_check
          %p1083 = pneg %p109
        $region42: #{tpu_custom_call.1} parent=39 // pred_check_branch
          %1085 = sbr.rel (%p1083) target = $region44
        $region43: #{tpu_custom_call.1} parent=39 // pred_region
          %s1086 = sand.u32 %s94, 1
          %s1087 = scalar_lea.sflag [#allocation3], %s1086
          %s1088 = sand.u32 %s94, 1
          %s1089 = smul.addr %s1088, 24
          %s1090 = scalar_lea.vmem [#allocation2], %s1089
          %1092 = dma.done %s1087, 384
        $region44: #{tpu_custom_call.1} parent=39 // pred_fallthru
          _
      $region40: #{tpu_custom_call.1} parent=5 // pred_fallthru
        _
    $region6: #{tpu_custom_call.1} parent=1 // loop_footer
      %s16 = sadd.s32 1, %s12
    $region7: #{tpu_custom_call.1} parent=1 // loop_footer_branch
      %11 = sbr.rel target = $region3
    $region8: #{tpu_custom_call.1} parent=1 // loop_exit
      _
    %1093 = vsyncpa [#allocation3], 1
    %s1094 = scalar_lea.sflag [#allocation3], 1
    %1095 = vsyncpa %s1094, 1

</llo_original>
